<compile_context>
chip_gen: v7x
topology: tpu7x:2x2x1
jax: 0.10.0
libtpu: 0.0.40
codegen_flags: <defaults>
</compile_context>

<pallas_src>
import functools
import math

import jax
import jax.numpy as jnp
from jax.experimental import pallas as pl
from jax.experimental.pallas import tpu as pltpu


def _round_up(x, m):
    return ((x + m - 1) // m) * m


def _vmem_budget_bytes():
    try:
        cap = pltpu.get_tpu_info().vmem_capacity_bytes
    except Exception:
        cap = 64 << 20                  # conservative (v7x-sized) fallback
    return (cap * 3) // 4               # 48 MiB on v7x, 96 MiB on v5e/v6e


def _footprint_bytes(c_in, c_out, tl):
    # bf16 weight (counted double-buffered to be safe) + double-buffered f32
    # x block + double-buffered f32 out block + 1 MiB slack.
    return 2 * c_out * c_in * 2 + 2 * (c_in + c_out) * tl * 4 + (1 << 20)


def _plan_l(l_out, c_in, c_out, budget):
    """Pick the L_out tile width (lane axis of both the x and out blocks)."""
    if l_out <= 512 and _footprint_bytes(c_in, c_out, l_out) <= budget:
        return l_out, l_out             # one full-width tile, no padding
    tl = 128
    for cand in (512, 256, 128):
        if _footprint_bytes(c_in, c_out, cand) <= budget:
            tl = cand
            break
    # TODO(synk): add a C_in (K) grid split with an f32 VMEM accumulator for
    # channel counts so large that even tl=128 exceeds the VMEM budget.
    return tl, _round_up(l_out, tl)


def prepare_weight(w):
    """(C_out, C_in, 1) Conv1d weight -> (C_out, C_in) bf16 (done once)."""
    assert w.shape[-1] == 1, "Downsample uses kernel_size=1"
    return w[:, :, 0].astype(jnp.bfloat16)


def _conv1x1_kernel(w_ref, x_ref, o_ref):
    # w_ref: (C_out, C_in) bf16, VMEM-resident (constant block index).
    # x_ref: (1, C_in, tl) f32 — cast to bf16 in-kernel (no padded x copy).
    x = x_ref[0].astype(jnp.bfloat16)                        # (C_in, tl)
    o_ref[0] = jnp.dot(w_ref[...], x, preferred_element_type=jnp.float32)


def downsample_forward(x, w2d, *, stride):
    """x: (B, C_in, L) f32; w2d: (C_out, C_in) bf16 -> (B, C_out, L_out) f32."""
    B, C_in, L = x.shape
    C_out = w2d.shape[0]
    L_out = (L - 1) // stride + 1

    # kernel_size=1 strided conv == matmul on the stride-subsampled sequence
    x_s = x if stride == 1 else x[:, :, ::stride]            # (B, C_in, L_out)

    budget = _vmem_budget_bytes()
    tl, L_pad = _plan_l(L_out, C_in, C_out, budget)
    if L_pad != L_out:
        x_s = jnp.pad(x_s, ((0, 0), (0, 0), (0, L_pad - L_out)))

    grid = (B, L_pad // tl)

    out = pl.pallas_call(
        _conv1x1_kernel,
        out_shape=jax.ShapeDtypeStruct((B, C_out, L_pad), jnp.float32),
        grid_spec=pltpu.PrefetchScalarGridSpec(
            num_scalar_prefetch=0,
            grid=grid,
            in_specs=[
                # whole weight, constant block index -> DMA'd once, resident
                pl.BlockSpec((C_out, C_in), lambda b, l: (0, 0)),
                # per-batch, all channels, one lane-dense L_out tile
                pl.BlockSpec((1, C_in, tl), lambda b, l: (b, 0, l)),
            ],
            out_specs=pl.BlockSpec((1, C_out, tl), lambda b, l: (b, 0, l)),
        ),
        compiler_params=pltpu.CompilerParams(
            dimension_semantics=("parallel", "parallel"),
            vmem_limit_bytes=int(budget),
        ),
    )(w2d, x_s)

    if L_pad != L_out:
        out = out[:, :, :L_out]
    return out


if __name__ == "__main__":
    B, C_in, C_out, L, stride = 2, 64, 128, 32, 2

    key = jax.random.PRNGKey(0)
    kx, kw = jax.random.split(key)
    x = jax.random.normal(kx, (B, C_in, L), jnp.float32)
    w = jax.random.normal(kw, (C_out, C_in, 1), jnp.float32) / math.sqrt(C_in)

    w2d = prepare_weight(w)     # (C_out, C_in) bf16, prepared once outside jit

    fwd = jax.jit(functools.partial(downsample_forward, stride=stride))
    out = jax.block_until_ready(fwd(x, w2d))

    L_out = (L - 1) // stride + 1
    assert out.shape == (B, C_out, L_out), out.shape
    assert bool(jnp.all(jnp.isfinite(out)))

    # sanity check vs a plain-JAX f32 reference (tolerance sized for bf16 MXU)
    ref = jnp.einsum("bcl,oc->bol", x[:, :, ::stride], w[:, :, 0])
    assert bool(jnp.allclose(out, ref, rtol=5e-2, atol=5e-2)), (
        float(jnp.max(jnp.abs(out - ref))))

    print("KERNEL_OK")
</pallas_src>

<mosaic_0001>
module attributes {stable_mosaic.version = 11 : i64} {
  func.func @_conv1x1_kernel(%arg0: i32, %arg1: i32, %arg2: memref<128x64xbf16, #tpu.memory_space<vmem>>, %arg3: memref<1x64x16xf32, #tpu.memory_space<vmem>>, %arg4: memref<1x128x16xf32, #tpu.memory_space<vmem>>) attributes {dimension_semantics = [#tpu.dimension_semantics<parallel>, #tpu.dimension_semantics<parallel>], iteration_bounds = array<i64: 2, 1>, scalar_prefetch = 0 : i64, scratch_operands = 0 : i64, tpu.core_type = #tpu.core_type<tc>, window_params = [{pipeline_mode = #tpu.pipeline_mode<synchronous>, transform_indices = @transform_0, window_bounds = array<i64: 128, 64>}, {transform_indices = @transform_1, window_bounds = array<i64: 1, 64, 16>}, {transform_indices = @transform_2, window_bounds = array<i64: 1, 128, 16>}]} {
    %c0 = arith.constant 0 : index
    %c0_0 = arith.constant 0 : index
    %c0_1 = arith.constant 0 : index
    %0 = vector.load %arg3[%c0, %c0_0, %c0_1] : memref<1x64x16xf32, #tpu.memory_space<vmem>>, vector<1x64x16xf32>
    %1 = vector.shape_cast %0 : vector<1x64x16xf32> to vector<64x16xf32>
    %2 = arith.truncf %1 : vector<64x16xf32> to vector<64x16xbf16>
    %c0_2 = arith.constant 0 : index
    %c0_3 = arith.constant 0 : index
    %3 = vector.load %arg2[%c0_2, %c0_3] : memref<128x64xbf16, #tpu.memory_space<vmem>>, vector<128x64xbf16>
    %cst = arith.constant dense<0.000000e+00> : vector<128x16xf32>
    %4 = tpu.matmul %3, %2, %cst {dimension_numbers = #tpu.dot_dimension_numbers<[1], [0], [0], [1], [0, 0, 1, 1], [], []>} : vector<128x64xbf16>, vector<64x16xbf16>, vector<128x16xf32> -> vector<128x16xf32>
    %c0_4 = arith.constant 0 : index
    %c0_5 = arith.constant 0 : index
    %c0_6 = arith.constant 0 : index
    %5 = vector.load %arg4[%c0_4, %c0_5, %c0_6] : memref<1x128x16xf32, #tpu.memory_space<vmem>>, vector<1x128x16xf32>
    %6 = vector.shape_cast %5 : vector<1x128x16xf32> to vector<128x16xf32>
    %7 = vector.shape_cast %4 : vector<128x16xf32> to vector<1x128x16xf32>
    tpu.vector_store %arg4[%c0_4, %c0_5, %c0_6], %7 {strides = array<i32>} : memref<1x128x16xf32, #tpu.memory_space<vmem>>, vector<1x128x16xf32>,
    return
  }
  func.func @transform_0(%arg0: i32, %arg1: i32) -> (i32, i32) {
    %c0_i32 = arith.constant 0 : i32
    %c0_i32_0 = arith.constant 0 : i32
    %c0_i32_1 = arith.constant 0 : i32
    return %c0_i32, %c0_i32_0 : i32, i32
  }
  func.func @transform_1(%arg0: i32, %arg1: i32) -> (i32, i32, i32) {
    %c0_i32 = arith.constant 0 : i32
    %c0_i32_0 = arith.constant 0 : i32
    return %arg0, %c0_i32, %arg1 : i32, i32, i32
  }
  func.func @transform_2(%arg0: i32, %arg1: i32) -> (i32, i32, i32) {
    %c0_i32 = arith.constant 0 : i32
    %c0_i32_0 = arith.constant 0 : i32
    return %arg0, %c0_i32, %arg1 : i32, i32, i32
  }
}

</mosaic_0001>

<llo_original>
// kernel: downsample_forward.1
$region0: #{downsample_forward.1}
  #allocation0 [shape = 'u32[]', space=smem, size = 0x4, offset = 0x4, fixed_abs, tag = 'smem constant byte address 0x4 - core index']
  #allocation1 [shape = 'u32[144,128]{1,0:T(1,128)}', space=vmem, size = 0x12000, scoped, tag = 'internal scratch']
  %s0 = inlined_call_operand.vmem [shape: bf16[128,64], index: 0, kind: input, shape index: {}]
  %s1 = inlined_call_operand.vmem [shape: f32[2,64,16], index: 1, kind: input, shape index: {}]
  %s2 = inlined_call_operand.vmem [shape: f32[2,128,16], index: 2, kind: output, shape index: {}]
  %s3 = sld [smem:[#allocation0]]
  $region41: #{downsample_forward.1} parent=0
    _
  %s5 = ssub.s32 1, %s3
  %s6 = scalar_select 0, %s5, %s3
  loop: start=0, step=1, limit=4
  $region2: #{downsample_forward.1} parent=0 // loop_pre_header
    _
  $region3: #{downsample_forward.1} parent=0 // loop_header
    %s8 = sphi 0, %s12
    %p9 = scmp.ge.s32.totalorder %s8, 4
    %s15 = sphi 0, %s27
    %s16 = sphi 0, %s23
    %s17 = sphi 0, %s15
    %s18 = sphi 0, %s16
    %s19 = sphi 0, %s17
    %s20 = sphi 0, %s18
    %s28 = sphi 0, %s28
    %s30 = sphi 0, %s28
    %s31 = sphi 0, %s30
    %s45 = sphi 0, %s31
    %s53 = sphi 0, %s55
    %s56 = sphi 0, %s53
    %s57 = sphi 0, %s56
    %s73 = sphi 0, %s57
    %s81 = sphi 0, %s83
    %s84 = sphi 0, %s81
    %s85 = sphi 0, %s84
    %s101 = sphi 0, %s85
  $region4: #{downsample_forward.1} parent=0 // loop_header_branch
    %11 = sbr.rel (%p9) target = $region8
  $region5: #{downsample_forward.1} parent=0 // loop_body
    %s13 = ssub.s32 %s8, 1
    %s14 = ssub.s32 %s8, 2
    %s21 = sadd.s32 1, %s16
    %p22 = scmp.ge.s32.totalorder %s21, 1
    %s23 = scalar_select %p22, 0, %s21
    %s24 = sadd.s32 1, %s15
    %s25 = scalar_select %p22, %s24, %s15
    %p26 = scmp.ge.s32.totalorder %s25, 2
    %s27 = scalar_select %p26, 0, %s25
    %s29 = sadd.s32 %s28, 1
    %p32 = scmp.eq.s32.totalorder %s8, 1
    %p33 = scmp.ne.s32.totalorder %s28, %s30
    %p34 = scmp.eq.s32.totalorder %s8, 0
    %p35 = por %p33, %p34
    %p36 = scmp.ne.s32.totalorder %s28, %s30
    %p37 = scmp.eq.s32.totalorder %s13, 1
    %p38 = por %p36, %p37
    %p39 = scmp.ne.s32.totalorder %s30, %s31
    %p40 = scmp.eq.s32.totalorder %s13, 0
    %p41 = por %p39, %p40
    %p42 = scmp.ne.s32.totalorder %s30, %s31
    %p43 = scmp.eq.s32.totalorder %s14, 1
    %p44 = por %p42, %p43
    %p46 = scmp.ne.s32.totalorder %s31, %s45
    %p47 = scmp.eq.s32.totalorder %s14, 0
    %p48 = por %p46, %p47
    %s49 = ssub.s32 %s15, %s27
    %s50 = ssub.s32 %s16, %s23
    %s51 = sor.u32 %s49, %s50
    %p52 = scmp.eq.s32.totalorder %s51, 0
    %s54 = sadd.s32 %s53, 1
    %s55 = scalar_select %p52, %s53, %s54
    %p58 = pneg %p52
    %p59 = scmp.eq.s32.totalorder %s8, 1
    %p60 = por %p58, %p59
    %p61 = scmp.ne.s32.totalorder %s53, %s56
    %p62 = scmp.eq.s32.totalorder %s8, 0
    %p63 = por %p61, %p62
    %p64 = scmp.ne.s32.totalorder %s53, %s56
    %p65 = scmp.eq.s32.totalorder %s13, 1
    %p66 = por %p64, %p65
    %p67 = scmp.ne.s32.totalorder %s56, %s57
    %p68 = scmp.eq.s32.totalorder %s13, 0
    %p69 = por %p67, %p68
    %p70 = scmp.ne.s32.totalorder %s56, %s57
    %p71 = scmp.eq.s32.totalorder %s14, 1
    %p72 = por %p70, %p71
    %p74 = scmp.ne.s32.totalorder %s57, %s73
    %p75 = scmp.eq.s32.totalorder %s14, 0
    %p76 = por %p74, %p75
    %s77 = ssub.s32 %s15, %s27
    %s78 = ssub.s32 %s16, %s23
    %s79 = sor.u32 %s77, %s78
    %p80 = scmp.eq.s32.totalorder %s79, 0
    %s82 = sadd.s32 %s81, 1
    %s83 = scalar_select %p80, %s81, %s82
    %p86 = pneg %p80
    %p87 = scmp.eq.s32.totalorder %s8, 1
    %p88 = por %p86, %p87
    %p89 = scmp.ne.s32.totalorder %s81, %s84
    %p90 = scmp.eq.s32.totalorder %s8, 0
    %p91 = por %p89, %p90
    %p92 = scmp.ne.s32.totalorder %s81, %s84
    %p93 = scmp.eq.s32.totalorder %s13, 1
    %p94 = por %p92, %p93
    %p95 = scmp.ne.s32.totalorder %s84, %s85
    %p96 = scmp.eq.s32.totalorder %s13, 0
    %p97 = por %p95, %p96
    %p98 = scmp.ne.s32.totalorder %s84, %s85
    %p99 = scmp.eq.s32.totalorder %s14, 1
    %p100 = por %p98, %p99
    %p102 = scmp.ne.s32.totalorder %s85, %s101
    %p103 = scmp.eq.s32.totalorder %s14, 0
    %p104 = por %p102, %p103
    %p105 = scmp.le.s32.totalorder 1, %s8
    %p106 = scmp.lt.s32.totalorder %s8, 3
    %p107 = pnand %p105, %p106
    %p108 = pneg %p107
    // Predicated region
    $region9: #{downsample_forward.1} parent=5 // pred_check
      _
    $region10: #{downsample_forward.1} parent=5 // pred_check_branch
      %110 = sbr.rel (%p107) target = $region12
    $region11: #{downsample_forward.1} parent=5 // pred_region
      %s111 = ssub.s32 %s8, 1
      // Predicated region
      $region13: #{downsample_forward.1} parent=11 // pred_check
        %p112 = pneg %p41
      $region14: #{downsample_forward.1} parent=11 // pred_check_branch
        %114 = sbr.rel (%p112) target = $region16
      $region15: #{downsample_forward.1} parent=11 // pred_region
        _
      $region16: #{downsample_forward.1} parent=11 // pred_fallthru
        _
    $region12: #{downsample_forward.1} parent=5 // pred_fallthru
      _
    %p115 = scmp.lt.s32.totalorder %s8, 2
    // Predicated region
    $region17: #{downsample_forward.1} parent=5 // pred_check
      %p116 = pneg %p115
    $region18: #{downsample_forward.1} parent=5 // pred_check_branch
      %118 = sbr.rel (%p116) target = $region20
    $region19: #{downsample_forward.1} parent=5 // pred_region
      // Predicated region
      $region21: #{downsample_forward.1} parent=19 // pred_check
        %p119 = pneg %p63
      $region22: #{downsample_forward.1} parent=19 // pred_check_branch
        %121 = sbr.rel (%p119) target = $region24
      $region23: #{downsample_forward.1} parent=19 // pred_region
        %p122 = scmp.lt.s32.totalorder %s15, 1
        %s123 = scalar_select %p122, %s15, 1
        %p124 = scmp.lt.s32.totalorder %s16, 0
        %s125 = scalar_select %p124, %s16, 0
        %s126 = smul.addr %s123, 8
        %s127 = sadd.s32 %s125, %s126
        %s128 = smul.addr %s127, 8
        %s129 = scalar_lea.vmem %s1, %s128
      $region24: #{downsample_forward.1} parent=19 // pred_fallthru
        _
    $region20: #{downsample_forward.1} parent=5 // pred_fallthru
      _
    %p130 = scmp.le.s32.totalorder 1, %s8
    %p131 = scmp.lt.s32.totalorder %s8, 3
    %p132 = pnand %p130, %p131
    %p133 = pneg %p132
    // Predicated region
    $region25: #{downsample_forward.1} parent=5 // pred_check
      _
    $region26: #{downsample_forward.1} parent=5 // pred_check_branch
      %135 = sbr.rel (%p132) target = $region28
    $region27: #{downsample_forward.1} parent=5 // pred_region
      %s136 = ssub.s32 %s8, 1
      %p137 = pneg %p41
      %p138 = pneg %p38
      %p139 = scmp.lt.s32.totalorder %s17, 1
      %s140 = scalar_select %p139, %s17, 1
      %p141 = scmp.lt.s32.totalorder %s18, 0
      %s142 = scalar_select %p141, %s18, 0
      %s143 = smul.addr %s140, 8
      %s144 = sadd.s32 %s142, %s143
      %s145 = smul.addr %s144, 8
      %s146 = scalar_lea.vmem %s1, %s145
      %p147 = pneg %p69
      %p148 = pneg %p66
      %p149 = pneg %p97
      %p150 = pneg %p94
      %p151 = scmp.lt.s32.totalorder %s17, 1
      %s152 = scalar_select %p151, %s17, 1
      %p153 = scmp.lt.s32.totalorder %s18, 0
      %s154 = scalar_select %p153, %s18, 0
      %s155 = smul.addr %s152, 16
      %s156 = sadd.s32 %s154, %s155
      %s157 = smul.addr %s156, 8
      %s158 = scalar_lea.vmem %s2, %s157
      %p159 = scmp.lt.s32.totalorder %s17, 1
      %s160 = scalar_select %p159, %s17, 1
      %p161 = scmp.lt.s32.totalorder %s18, 0
      %s162 = scalar_select %p161, %s18, 0
      %s163 = smul.addr %s160, 8
      %s164 = sadd.s32 %s162, %s163
      %s165 = smul.addr %s164, 8
      %s166 = scalar_lea.vmem %s1, %s165
      %p167 = scmp.lt.s32.totalorder %s17, 1
      %s168 = scalar_select %p167, %s17, 1
      %p169 = scmp.lt.s32.totalorder %s18, 0
      %s170 = scalar_select %p169, %s18, 0
      %s171 = smul.addr %s168, 16
      %s172 = sadd.s32 %s170, %s171
      %s173 = smul.addr %s172, 8
      %s174 = scalar_lea.vmem %s2, %s173
      %v176 = vld [vmem:[%s166] sm:$0xff]
      %v177 = vld [vmem:[%s166 + $0x8] sm:$0xff]
      %v178 = vld [vmem:[%s166 + $0x10] sm:$0xff]
      %v179 = vld [vmem:[%s166 + $0x18] sm:$0xff]
      %v180 = vld [vmem:[%s166 + $0x20] sm:$0xff]
      %v181 = vld [vmem:[%s166 + $0x28] sm:$0xff]
      %v182 = vld [vmem:[%s166 + $0x30] sm:$0xff]
      %v183 = vld [vmem:[%s166 + $0x38] sm:$0xff]
      %v184 = vpack.c.bf16 %v177, %v176
      %v185 = vpack.c.bf16 %v179, %v178
      %v186 = vpack.c.bf16 %v181, %v180
      %v187 = vpack.c.bf16 %v183, %v182
      %v188 = vld [vmem:[%s0] sm:$0xf]
      %v189 = vld [vmem:[%s0 + $0x4] sm:$0xf]
      %v190 = vld [vmem:[%s0 + $0x8] sm:$0xf]
      %v191 = vld [vmem:[%s0 + $0xc] sm:$0xf]
      %v192 = vld [vmem:[%s0 + $0x10] sm:$0xf]
      %v193 = vld [vmem:[%s0 + $0x14] sm:$0xf]
      %v194 = vld [vmem:[%s0 + $0x18] sm:$0xf]
      %v195 = vld [vmem:[%s0 + $0x1c] sm:$0xf]
      %v196 = vld [vmem:[%s0 + $0x20] sm:$0xf]
      %v197 = vld [vmem:[%s0 + $0x24] sm:$0xf]
      %v198 = vld [vmem:[%s0 + $0x28] sm:$0xf]
      %v199 = vld [vmem:[%s0 + $0x2c] sm:$0xf]
      %v200 = vld [vmem:[%s0 + $0x30] sm:$0xf]
      %v201 = vld [vmem:[%s0 + $0x34] sm:$0xf]
      %v202 = vld [vmem:[%s0 + $0x38] sm:$0xf]
      %v203 = vld [vmem:[%s0 + $0x3c] sm:$0xf]
      %v220 = vunpack.c.l.b16 %v188
      %v221 = vunpack.c.l.b16 %v189
      %v222 = vunpack.c.l.b16 %v190
      %v223 = vunpack.c.l.b16 %v191
      %v224 = vunpack.c.l.b16 %v192
      %v225 = vunpack.c.l.b16 %v193
      %v226 = vunpack.c.l.b16 %v194
      %v227 = vunpack.c.l.b16 %v195
      %v228 = vunpack.c.l.b16 %v196
      %v229 = vunpack.c.l.b16 %v197
      %v230 = vunpack.c.l.b16 %v198
      %v231 = vunpack.c.l.b16 %v199
      %v232 = vunpack.c.l.b16 %v200
      %v233 = vunpack.c.l.b16 %v201
      %v234 = vunpack.c.l.b16 %v202
      %v235 = vunpack.c.l.b16 %v203
      %v236 = vpack.c.b16 %v221, %v220
      %v237 = vpack.c.b16 %v223, %v222
      %v238 = vpack.c.b16 %v225, %v224
      %v239 = vpack.c.b16 %v227, %v226
      %v240 = vpack.c.b16 %v229, %v228
      %v241 = vpack.c.b16 %v231, %v230
      %v242 = vpack.c.b16 %v233, %v232
      %v243 = vpack.c.b16 %v235, %v234
      %vm244 = vcmask 523264
      %v246 = vsel %vm244, %v236, 0
      %v249 = vsel %vm244, %v237, 0
      %v252 = vsel %vm244, %v238, 0
      %v255 = vsel %vm244, %v239, 0
      %v258 = vsel %vm244, %v240, 0
      %v261 = vsel %vm244, %v241, 0
      %v264 = vsel %vm244, %v242, 0
      %v267 = vsel %vm244, %v243, 0
      %269 = vmatprep.subr.bf16.mxu0 0
      %270 = vmatpush1.bf16.msra.mxu0 %v184
      %271 = vmatprep.subr.bf16.mxu0 0
      %272 = vmatpush1.bf16.msra.mxu0 %v185
      %273 = vmatprep.subr.bf16.mxu0 0
      %274 = vmatpush1.bf16.msra.mxu0 %v186
      %275 = vmatprep.subr.bf16.mxu0 0
      %276 = vmatpush1.bf16.msra.mxu0 %v187
      %277 = vmatprep.subr.bf16.mxu0 0
      %278 = vmatpush1.bf16.msra.mxu0 0
      %279 = vmatprep.subr.bf16.mxu0 0
      %280 = vmatpush1.bf16.msra.mxu0 0
      %281 = vmatprep.subr.bf16.mxu0 0
      %282 = vmatpush1.bf16.msra.mxu0 0
      %283 = vmatprep.subr.bf16.mxu0 0
      %284 = vmatpush1.bf16.msra.mxu0 0
      %285 = vmatprep.subr.bf16.mxu0 0
      %286 = vmatpush1.bf16.msra.mxu0 0
      %287 = vmatprep.subr.bf16.mxu0 0
      %288 = vmatpush1.bf16.msra.mxu0 0
      %289 = vmatprep.subr.bf16.mxu0 0
      %290 = vmatpush1.bf16.msra.mxu0 0
      %291 = vmatprep.subr.bf16.mxu0 0
      %292 = vmatpush1.bf16.msra.mxu0 0
      %293 = vmatprep.subr.bf16.mxu0 0
      %294 = vmatpush1.bf16.msra.mxu0 0
      %295 = vmatprep.subr.bf16.mxu0 0
      %296 = vmatpush1.bf16.msra.mxu0 0
      %297 = vmatprep.subr.bf16.mxu0 0
      %298 = vmatpush1.bf16.msra.mxu0 0
      %299 = vmatprep.subr.bf16.mxu0 0
      %300 = vmatpush1.bf16.msra.mxu0 0
      %301 = vmatprep.mubr.bf16.mxu0 0
      %302 = vmatmul.mubr.bf16.gmra.mrb[0].mxu0 %v246
      %v303 = vpop.f32.mrb[0].mxu0
      %v304 = vadd.f32 0.0, %v303
      %v305 = vpop.f32.mrb[0].mxu0
      %v306 = vpop.f32.mrb[0].mxu0
      %v307 = vadd.f32 0.0, %v306
      %v308 = vpop.f32.mrb[0].mxu0
      %309 = vmatprep.mubr.bf16.mxu0 0
      %310 = vmatmul.mubr.bf16.gmra.mrb[0].mxu0 %v249
      %v311 = vpop.f32.mrb[0].mxu0
      %v312 = vadd.f32 0.0, %v311
      %v313 = vpop.f32.mrb[0].mxu0
      %v314 = vpop.f32.mrb[0].mxu0
      %v315 = vadd.f32 0.0, %v314
      %v316 = vpop.f32.mrb[0].mxu0
      %317 = vmatprep.mubr.bf16.mxu0 0
      %318 = vmatmul.mubr.bf16.gmra.mrb[0].mxu0 %v252
      %v319 = vpop.f32.mrb[0].mxu0
      %v320 = vadd.f32 0.0, %v319
      %v321 = vpop.f32.mrb[0].mxu0
      %v322 = vpop.f32.mrb[0].mxu0
      %v323 = vadd.f32 0.0, %v322
      %v324 = vpop.f32.mrb[0].mxu0
      %325 = vmatprep.mubr.bf16.mxu0 0
      %326 = vmatmul.mubr.bf16.gmra.mrb[0].mxu0 %v255
      %v327 = vpop.f32.mrb[0].mxu0
      %v328 = vadd.f32 0.0, %v327
      %v329 = vpop.f32.mrb[0].mxu0
      %v330 = vpop.f32.mrb[0].mxu0
      %v331 = vadd.f32 0.0, %v330
      %v332 = vpop.f32.mrb[0].mxu0
      %333 = vmatprep.mubr.bf16.mxu0 0
      %334 = vmatmul.mubr.bf16.gmra.mrb[0].mxu0 %v258
      %v335 = vpop.f32.mrb[0].mxu0
      %v336 = vadd.f32 0.0, %v335
      %v337 = vpop.f32.mrb[0].mxu0
      %v338 = vpop.f32.mrb[0].mxu0
      %v339 = vadd.f32 0.0, %v338
      %v340 = vpop.f32.mrb[0].mxu0
      %341 = vmatprep.mubr.bf16.mxu0 0
      %342 = vmatmul.mubr.bf16.gmra.mrb[0].mxu0 %v261
      %v343 = vpop.f32.mrb[0].mxu0
      %v344 = vadd.f32 0.0, %v343
      %v345 = vpop.f32.mrb[0].mxu0
      %v346 = vpop.f32.mrb[0].mxu0
      %v347 = vadd.f32 0.0, %v346
      %v348 = vpop.f32.mrb[0].mxu0
      %349 = vmatprep.mubr.bf16.mxu0 0
      %350 = vmatmul.mubr.bf16.gmra.mrb[0].mxu0 %v264
      %v351 = vpop.f32.mrb[0].mxu0
      %v352 = vadd.f32 0.0, %v351
      %v353 = vpop.f32.mrb[0].mxu0
      %v354 = vpop.f32.mrb[0].mxu0
      %v355 = vadd.f32 0.0, %v354
      %v356 = vpop.f32.mrb[0].mxu0
      %357 = vmatprep.mubr.bf16.mxu0 0
      %358 = vmatmul.mubr.bf16.gmra.mrb[0].mxu0 %v267
      %v359 = vpop.f32.mrb[0].mxu0
      %v360 = vadd.f32 0.0, %v359
      %v361 = vpop.f32.mrb[0].mxu0
      %v362 = vpop.f32.mrb[0].mxu0
      %v363 = vadd.f32 0.0, %v362
      %v364 = vpop.f32.mrb[0].mxu0
      %365 = vdwg.mxu0
      %vm366 = vcmask 130048
      %367 = vst.msk [vmem:[%s174] sm:$0xff] %vm366, %v304
      %368 = vst.msk [vmem:[%s174 + $0x8] sm:$0xff] %vm366, %v307
      %369 = vst.msk [vmem:[%s174 + $0x10] sm:$0xff] %vm366, %v312
      %370 = vst.msk [vmem:[%s174 + $0x18] sm:$0xff] %vm366, %v315
      %371 = vst.msk [vmem:[%s174 + $0x20] sm:$0xff] %vm366, %v320
      %372 = vst.msk [vmem:[%s174 + $0x28] sm:$0xff] %vm366, %v323
      %373 = vst.msk [vmem:[%s174 + $0x30] sm:$0xff] %vm366, %v328
      %374 = vst.msk [vmem:[%s174 + $0x38] sm:$0xff] %vm366, %v331
      %375 = vst.msk [vmem:[%s174 + $0x40] sm:$0xff] %vm366, %v336
      %376 = vst.msk [vmem:[%s174 + $0x48] sm:$0xff] %vm366, %v339
      %377 = vst.msk [vmem:[%s174 + $0x50] sm:$0xff] %vm366, %v344
      %378 = vst.msk [vmem:[%s174 + $0x58] sm:$0xff] %vm366, %v347
      %379 = vst.msk [vmem:[%s174 + $0x60] sm:$0xff] %vm366, %v352
      %380 = vst.msk [vmem:[%s174 + $0x68] sm:$0xff] %vm366, %v355
      %381 = vst.msk [vmem:[%s174 + $0x70] sm:$0xff] %vm366, %v360
      %382 = vst.msk [vmem:[%s174 + $0x78] sm:$0xff] %vm366, %v363
      %p383 = scmp.lt.s32.totalorder %s17, 1
      %s384 = scalar_select %p383, %s17, 1
      %p385 = scmp.lt.s32.totalorder %s18, 0
      %s386 = scalar_select %p385, %s18, 0
      %s387 = smul.addr %s384, 16
      %s388 = sadd.s32 %s386, %s387
      %s389 = smul.addr %s388, 8
      %s390 = scalar_lea.vmem %s2, %s389
      // Predicated region
      $region29: #{downsample_forward.1} parent=27 // pred_check
        %p391 = pneg %p94
      $region30: #{downsample_forward.1} parent=27 // pred_check_branch
        %393 = sbr.rel (%p391) target = $region32
      $region31: #{downsample_forward.1} parent=27 // pred_region
        _
      $region32: #{downsample_forward.1} parent=27 // pred_fallthru
        _
    $region28: #{downsample_forward.1} parent=5 // pred_fallthru
      _
    %p394 = scmp.le.s32.totalorder 2, %s8
    // Predicated region
    $region33: #{downsample_forward.1} parent=5 // pred_check
      %p395 = pneg %p394
    $region34: #{downsample_forward.1} parent=5 // pred_check_branch
      %397 = sbr.rel (%p395) target = $region36
    $region35: #{downsample_forward.1} parent=5 // pred_region
      %s398 = ssub.s32 %s8, 2
      // Predicated region
      $region37: #{downsample_forward.1} parent=35 // pred_check
        %p399 = pneg %p100
      $region38: #{downsample_forward.1} parent=35 // pred_check_branch
        %401 = sbr.rel (%p399) target = $region40
      $region39: #{downsample_forward.1} parent=35 // pred_region
        %p402 = scmp.lt.s32.totalorder %s19, 1
        %s403 = scalar_select %p402, %s19, 1
        %p404 = scmp.lt.s32.totalorder %s20, 0
        %s405 = scalar_select %p404, %s20, 0
        %s406 = smul.addr %s403, 16
        %s407 = sadd.s32 %s405, %s406
        %s408 = smul.addr %s407, 8
        %s409 = scalar_lea.vmem %s2, %s408
      $region40: #{downsample_forward.1} parent=35 // pred_fallthru
        _
    $region36: #{downsample_forward.1} parent=5 // pred_fallthru
      _
  $region6: #{downsample_forward.1} parent=0 // loop_footer
    %s12 = sadd.s32 1, %s8
  $region7: #{downsample_forward.1} parent=0 // loop_footer_branch
    %7 = sbr.rel target = $region3
  $region8: #{downsample_forward.1} parent=0 // loop_exit
    _

</llo_original>
